<compile_context>
chip_gen: v7x
topology: tpu7x:2x2x1
jax: 0.10.0
libtpu: 0.0.40
codegen_flags: <defaults>
</compile_context>

<pallas_src>
import functools

import jax
import jax.numpy as jnp
from jax.experimental import pallas as pl
from jax.experimental.pallas import tpu as pltpu


def _round_up(x, m):
    return ((x + m - 1) // m) * m


def _mlp(z, w1_ref, b1_ref, w2_ref, b2_ref):
    """f(z) = ReLU(z @ W1 + b1) @ W2 + b2. MXU dots, f32 accumulation/epilogue."""
    h = jnp.dot(z.astype(w1_ref.dtype), w1_ref[...],
                preferred_element_type=jnp.float32)
    h = jnp.maximum(h + b1_ref[...], 0.0)                      # bias + ReLU in f32 (VPU)
    out = jnp.dot(h.astype(w2_ref.dtype), w2_ref[...],
                  preferred_element_type=jnp.float32)
    return out + b2_ref[...]


def _gnn_ode_kernel(z_ref, w1_ref, b1_ref, w2_ref, b2_ref, o_ref):
    # z: (TB, D), w1: (D, H), b1: (1, H), w2: (H, D), b2: (1, D)
    o_ref[...] = _mlp(z_ref[...], w1_ref, b1_ref, w2_ref, b2_ref).astype(o_ref.dtype)


def _gnn_ode_rk4_kernel(dt, z_ref, w1_ref, b1_ref, w2_ref, b2_ref, o_ref):
    # One classic RK4 step of dz/dt = f(z), all 4 RHS evaluations fused in-kernel
    # so weights are loaded into VMEM once per batch tile.
    z = z_ref[...].astype(jnp.float32)
    f = lambda x: _mlp(x, w1_ref, b1_ref, w2_ref, b2_ref)
    k1 = f(z)
    k2 = f(z + (0.5 * dt) * k1)
    k3 = f(z + (0.5 * dt) * k2)
    k4 = f(z + dt * k3)
    o_ref[...] = (z + (dt / 6.0) * (k1 + 2.0 * k2 + 2.0 * k3 + k4)).astype(o_ref.dtype)


def _launch(kernel_body, z, w1, b1, w2, b2, *, block_b, compute_dtype, rhs_evals):
    B, D = z.shape
    H = w1.shape[1]
    out_dtype = z.dtype

    # Optional bf16 MXU inputs: halves HBM traffic for z (dominant at large B)
    # and doubles MXU throughput; accumulation and epilogue stay f32.
    if compute_dtype is not None:
        z = z.astype(compute_dtype)
        w1 = w1.astype(compute_dtype)
        w2 = w2.astype(compute_dtype)
    b1_2d = b1.astype(jnp.float32).reshape(1, H)
    b2_2d = b2.astype(jnp.float32).reshape(1, D)

    # Batch tile: multiple of 8 sublanes; default sized for v7x's 64 MiB VMEM
    # (activations per tile are only a few MiB even double-buffered).
    tb = min(_round_up(block_b, 8), _round_up(B, 8))
    b_pad = _round_up(B, tb)
    if b_pad != B:
        z = jnp.pad(z, ((0, b_pad - B), (0, 0)))
    grid = (b_pad // tb,)

    nbytes = lambda a: a.size * jnp.dtype(a.dtype).itemsize
    cost = pl.CostEstimate(
        flops=2 * rhs_evals * b_pad * (D * H + H * D),
        transcendentals=0,
        bytes_accessed=(nbytes(z) + nbytes(w1) + nbytes(b1_2d) + nbytes(w2)
                        + nbytes(b2_2d) + b_pad * D * jnp.dtype(out_dtype).itemsize),
    )

    out = pl.pallas_call(
        kernel_body,
        out_shape=jax.ShapeDtypeStruct((b_pad, D), out_dtype),
        grid=grid,
        in_specs=[
            pl.BlockSpec((tb, D), lambda i: (i, 0)),   # z: streamed, new tile per step
            pl.BlockSpec((D, H), lambda i: (0, 0)),    # W1: constant block -> VMEM-resident
            pl.BlockSpec((1, H), lambda i: (0, 0)),    # b1
            pl.BlockSpec((H, D), lambda i: (0, 0)),    # W2
            pl.BlockSpec((1, D), lambda i: (0, 0)),    # b2
        ],
        out_specs=pl.BlockSpec((tb, D), lambda i: (i, 0)),
        compiler_params=pltpu.CompilerParams(
            dimension_semantics=("parallel",)),        # 2x on v7x's two TensorCores
        cost_estimate=cost,
    )(z, w1, b1_2d, w2, b2_2d)

    return out[:B] if b_pad != B else out


def gnn_ode_func(t, z, w1, b1, w2, b2, *, block_b=2048, compute_dtype=None):
    """Pallas-TPU GNNODEFunc.forward(t, z) = ReLU(z@W1+b1)@W2+b2 (t ignored)."""
    del t  # unused, matches the PyTorch module
    return _launch(_gnn_ode_kernel, z, w1, b1, w2, b2,
                   block_b=block_b, compute_dtype=compute_dtype, rhs_evals=1)


def gnn_ode_rk4_step(t, z, dt, w1, b1, w2, b2, *, block_b=2048, compute_dtype=None):
    """One fused RK4 step of dz/dt = GNNODEFunc(t, z): 4 RHS evals in one kernel."""
    del t  # RHS ignores time
    body = functools.partial(_gnn_ode_rk4_kernel, float(dt))
    return _launch(body, z, w1, b1, w2, b2,
                   block_b=block_b, compute_dtype=compute_dtype, rhs_evals=4)


def init_params(key, latent_dim=16, hidden=128, dtype=jnp.float32):
    """Deterministic synthetic parameters (shapes match the nn.Linear layers)."""
    k1, k2, k3, k4 = jax.random.split(key, 4)
    # PyTorch Linear stores (out, in); we store transposed (in, out) for z @ W.
    s1 = 1.0 / jnp.sqrt(latent_dim)
    s2 = 1.0 / jnp.sqrt(hidden)
    w1 = jax.random.uniform(k1, (latent_dim, hidden), dtype, -s1, s1)
    b1 = jax.random.uniform(k2, (hidden,), dtype, -s1, s1)
    w2 = jax.random.uniform(k3, (hidden, latent_dim), dtype, -s2, s2)
    b2 = jax.random.uniform(k4, (latent_dim,), dtype, -s2, s2)
    return w1, b1, w2, b2


if __name__ == "__main__":
    latent_dim = 16
    batch = 8

    key = jax.random.PRNGKey(0)
    kz, kp = jax.random.split(key)
    z = jax.random.normal(kz, (batch, latent_dim), jnp.float32)
    t = jnp.float32(0.0)  # unused
    w1, b1, w2, b2 = init_params(kp, latent_dim=latent_dim)

    def mlp_ref(x):
        return jnp.maximum(x @ w1 + b1, 0.0) @ w2 + b2

    # 1) Module forward, f32 compute (exact semantics of GNNODEFunc.forward).
    out = jax.block_until_ready(gnn_ode_func(t, z, w1, b1, w2, b2))
    assert out.shape == (batch, latent_dim)
    assert jnp.allclose(out, mlp_ref(z), atol=1e-5, rtol=1e-5)

    # 2) Larger, non-tile-multiple batch: exercises grid + padding path (f32).
    z_big = jax.random.normal(kz, (1000, latent_dim), jnp.float32)
    out_big = jax.block_until_ready(
        gnn_ode_func(t, z_big, w1, b1, w2, b2, block_b=256))
    assert out_big.shape == (1000, latent_dim)
    assert jnp.allclose(out_big, mlp_ref(z_big), atol=1e-5, rtol=1e-5)

    # 3) Same, with bf16 MXU inputs (f32 accumulation) — looser tolerance.
    out_bf16 = jax.block_until_ready(
        gnn_ode_func(t, z_big, w1, b1, w2, b2, block_b=256,
                     compute_dtype=jnp.bfloat16))
    assert jnp.allclose(out_bf16, mlp_ref(z_big), atol=1e-1, rtol=1e-1)

    # 4) Fused RK4 step (4 RHS evaluations in one pallas_call).
    dt = 0.1
    out_rk4 = jax.block_until_ready(gnn_ode_rk4_step(t, z, dt, w1, b1, w2, b2))
    k1 = mlp_ref(z)
    k2 = mlp_ref(z + 0.5 * dt * k1)
    k3 = mlp_ref(z + 0.5 * dt * k2)
    k4 = mlp_ref(z + dt * k3)
    ref_rk4 = z + (dt / 6.0) * (k1 + 2 * k2 + 2 * k3 + k4)
    assert jnp.allclose(out_rk4, ref_rk4, atol=1e-4, rtol=1e-4)

    print("KERNEL_OK")
</pallas_src>

<mosaic_0001>
module attributes {stable_mosaic.version = 11 : i64} {
  func.func @_gnn_ode_kernel(%arg0: i32, %arg1: memref<8x16xf32, #tpu.memory_space<vmem>>, %arg2: memref<16x128xf32, #tpu.memory_space<vmem>>, %arg3: memref<1x128xf32, #tpu.memory_space<vmem>>, %arg4: memref<128x16xf32, #tpu.memory_space<vmem>>, %arg5: memref<1x16xf32, #tpu.memory_space<vmem>>, %arg6: memref<8x16xf32, #tpu.memory_space<vmem>>) attributes {dimension_semantics = [#tpu.dimension_semantics<parallel>], iteration_bounds = array<i64: 1>, scalar_prefetch = 0 : i64, scratch_operands = 0 : i64, tpu.core_type = #tpu.core_type<tc>, window_params = [{transform_indices = @transform_0, window_bounds = array<i64: 8, 16>}, {pipeline_mode = #tpu.pipeline_mode<synchronous>, transform_indices = @transform_1, window_bounds = array<i64: 16, 128>}, {pipeline_mode = #tpu.pipeline_mode<synchronous>, transform_indices = @transform_2, window_bounds = array<i64: 1, 128>}, {pipeline_mode = #tpu.pipeline_mode<synchronous>, transform_indices = @transform_3, window_bounds = array<i64: 128, 16>}, {pipeline_mode = #tpu.pipeline_mode<synchronous>, transform_indices = @transform_4, window_bounds = array<i64: 1, 16>}, {transform_indices = @transform_5, window_bounds = array<i64: 8, 16>}]} {
    %c0 = arith.constant 0 : index
    %c0_0 = arith.constant 0 : index
    %0 = vector.load %arg1[%c0, %c0_0] : memref<8x16xf32, #tpu.memory_space<vmem>>, vector<8x16xf32>
    %c0_1 = arith.constant 0 : index
    %c0_2 = arith.constant 0 : index
    %1 = vector.load %arg2[%c0_1, %c0_2] : memref<16x128xf32, #tpu.memory_space<vmem>>, vector<16x128xf32>
    %cst = arith.constant dense<0.000000e+00> : vector<8x128xf32>
    %2 = tpu.matmul %0, %1, %cst {dimension_numbers = #tpu.dot_dimension_numbers<[1], [0], [0], [1], [0, 0, 1, 1], [], []>} : vector<8x16xf32>, vector<16x128xf32>, vector<8x128xf32> -> vector<8x128xf32>
    %c0_3 = arith.constant 0 : index
    %c0_4 = arith.constant 0 : index
    %3 = vector.load %arg3[%c0_3, %c0_4] : memref<1x128xf32, #tpu.memory_space<vmem>>, vector<1x128xf32>
    %4 = vector.broadcast %3 : vector<1x128xf32> to vector<8x128xf32>
    %5 = arith.addf %2, %4 : vector<8x128xf32>
    %cst_5 = arith.constant 0.000000e+00 : f32
    %6 = vector.broadcast %cst_5 : f32 to vector<8x128xf32>
    %7 = arith.maximumf %5, %6 : vector<8x128xf32>
    %c0_6 = arith.constant 0 : index
    %c0_7 = arith.constant 0 : index
    %8 = vector.load %arg4[%c0_6, %c0_7] : memref<128x16xf32, #tpu.memory_space<vmem>>, vector<128x16xf32>
    %cst_8 = arith.constant dense<0.000000e+00> : vector<8x16xf32>
    %9 = tpu.matmul %7, %8, %cst_8 {dimension_numbers = #tpu.dot_dimension_numbers<[1], [0], [0], [1], [0, 0, 1, 1], [], []>} : vector<8x128xf32>, vector<128x16xf32>, vector<8x16xf32> -> vector<8x16xf32>
    %c0_9 = arith.constant 0 : index
    %c0_10 = arith.constant 0 : index
    %10 = vector.load %arg5[%c0_9, %c0_10] : memref<1x16xf32, #tpu.memory_space<vmem>>, vector<1x16xf32>
    %11 = vector.broadcast %10 : vector<1x16xf32> to vector<8x16xf32>
    %12 = arith.addf %9, %11 : vector<8x16xf32>
    %c0_11 = arith.constant 0 : index
    %c0_12 = arith.constant 0 : index
    %13 = vector.load %arg6[%c0_11, %c0_12] : memref<8x16xf32, #tpu.memory_space<vmem>>, vector<8x16xf32>
    tpu.vector_store %arg6[%c0_11, %c0_12], %12 {strides = array<i32>} : memref<8x16xf32, #tpu.memory_space<vmem>>, vector<8x16xf32>,
    return
  }
  func.func @transform_0(%arg0: i32) -> (i32, i32) {
    %c0_i32 = arith.constant 0 : i32
    %c0_i32_0 = arith.constant 0 : i32
    return %arg0, %c0_i32 : i32, i32
  }
  func.func @transform_1(%arg0: i32) -> (i32, i32) {
    %c0_i32 = arith.constant 0 : i32
    %c0_i32_0 = arith.constant 0 : i32
    %c0_i32_1 = arith.constant 0 : i32
    return %c0_i32, %c0_i32_0 : i32, i32
  }
  func.func @transform_2(%arg0: i32) -> (i32, i32) {
    %c0_i32 = arith.constant 0 : i32
    %c0_i32_0 = arith.constant 0 : i32
    %c0_i32_1 = arith.constant 0 : i32
    return %c0_i32, %c0_i32_0 : i32, i32
  }
  func.func @transform_3(%arg0: i32) -> (i32, i32) {
    %c0_i32 = arith.constant 0 : i32
    %c0_i32_0 = arith.constant 0 : i32
    %c0_i32_1 = arith.constant 0 : i32
    return %c0_i32, %c0_i32_0 : i32, i32
  }
  func.func @transform_4(%arg0: i32) -> (i32, i32) {
    %c0_i32 = arith.constant 0 : i32
    %c0_i32_0 = arith.constant 0 : i32
    %c0_i32_1 = arith.constant 0 : i32
    return %c0_i32, %c0_i32_0 : i32, i32
  }
  func.func @transform_5(%arg0: i32) -> (i32, i32) {
    %c0_i32 = arith.constant 0 : i32
    %c0_i32_0 = arith.constant 0 : i32
    return %arg0, %c0_i32 : i32, i32
  }
}

</mosaic_0001>

<llo_original>
// kernel: tpu_custom_call.1
$region0: #{tpu_custom_call.1}
  #allocation0 [shape = 'u32[]', space=smem, size = 0x4, offset = 0x4, fixed_abs, tag = 'smem constant byte address 0x4 - core index']
  #allocation1 [shape = 'u32[144,128]{1,0:T(1,128)}', space=vmem, size = 0x12000, scoped, tag = 'internal scratch']
  %s0 = inlined_call_operand.vmem [shape: f32[8,16], index: 0, kind: input, shape index: {}]
  %s1 = inlined_call_operand.vmem [shape: f32[16,128], index: 1, kind: input, shape index: {}]
  %s2 = inlined_call_operand.vmem [shape: f32[1,128], index: 2, kind: input, shape index: {}]
  %s3 = inlined_call_operand.vmem [shape: f32[128,16], index: 3, kind: input, shape index: {}]
  %s4 = inlined_call_operand.vmem [shape: f32[1,16], index: 4, kind: input, shape index: {}]
  %s5 = inlined_call_operand.hbm [shape: f32[8,16], index: 5, kind: output, shape index: {}]
  %s6 = sld [smem:[#allocation0]]
  $region30: #{tpu_custom_call.1} parent=0
    _
  %s8 = ssub.s32 1, %s6
  %s9 = scalar_select 0, %s8, %s6
  $region1: #{tpu_custom_call.1} parent=0
    #allocation2 [shape = 'u8[4096]{0}', space=vmem, size = 0x1000, scoped, tag = 'output window, operand 0, single buffered']
    #allocation3 [shape = 's32[1]{0}', space=sflag, size = 0x4, scoped, tag = 'scoped memory for tpu_custom_call.1']
    %10 = vsyncpa [#allocation3], 0
    // Predicated region
    $region2: #{tpu_custom_call.1} parent=1 // pred_check
      _
    $region3: #{tpu_custom_call.1} parent=1 // pred_check_branch
      %12 = sbr.rel (0) target = $region5
    $region4: #{tpu_custom_call.1} parent=1 // pred_region
      _
    $region5: #{tpu_custom_call.1} parent=1 // pred_fallthru
      _
    // Predicated region
    $region6: #{tpu_custom_call.1} parent=1 // pred_check
      _
    $region7: #{tpu_custom_call.1} parent=1 // pred_check_branch
      %14 = sbr.rel (0) target = $region9
    $region8: #{tpu_custom_call.1} parent=1 // pred_region
      _
    $region9: #{tpu_custom_call.1} parent=1 // pred_fallthru
      _
    // Predicated region
    $region10: #{tpu_custom_call.1} parent=1 // pred_check
      _
    $region11: #{tpu_custom_call.1} parent=1 // pred_check_branch
      %16 = sbr.rel (0) target = $region13
    $region12: #{tpu_custom_call.1} parent=1 // pred_region
      _
    $region13: #{tpu_custom_call.1} parent=1 // pred_fallthru
      _
    // Predicated region
    $region14: #{tpu_custom_call.1} parent=1 // pred_check
      _
    $region15: #{tpu_custom_call.1} parent=1 // pred_check_branch
      %18 = sbr.rel (0) target = $region17
    $region16: #{tpu_custom_call.1} parent=1 // pred_region
      _
    $region17: #{tpu_custom_call.1} parent=1 // pred_fallthru
      _
    // Predicated region
    $region18: #{tpu_custom_call.1} parent=1 // pred_check
      _
    $region19: #{tpu_custom_call.1} parent=1 // pred_check_branch
      %20 = sbr.rel (0) target = $region21
    $region20: #{tpu_custom_call.1} parent=1 // pred_region
      _
    $region21: #{tpu_custom_call.1} parent=1 // pred_fallthru
      _
    %v21 = vld [vmem:[%s0] sm:$0xff]
    %v22 = vld [vmem:[%s1] sm:$0xff]
    %v23 = vld [vmem:[%s1 + $0x8] sm:$0xff]
    %v24 = vld [vmem:[%s2] sm:$0x1]
    %v26 = vlaneseq
    %v27 = vshrl.u32 %v26, 7
    %v28 = vsub.s32 0, %v27
    %v29 = vrot.slane %v24, %v28
    %vm31 = vcmask 130048
    %v33 = vsel %vm31, %v21, 0
    %35 = vmatprep.subr.mxu0 0.0
    %36 = vmatpush1.msra.mxu0 %v22
    %37 = vmatprep.subr.mxu0 0.0
    %38 = vmatpush1.msra.mxu0 %v23
    %39 = vmatprep.subr.mxu0 0.0
    %40 = vmatpush1.msra.mxu0 0.0
    %41 = vmatprep.subr.mxu0 0.0
    %42 = vmatpush1.msra.mxu0 0.0
    %43 = vmatprep.subr.mxu0 0.0
    %44 = vmatpush1.msra.mxu0 0.0
    %45 = vmatprep.subr.mxu0 0.0
    %46 = vmatpush1.msra.mxu0 0.0
    %47 = vmatprep.subr.mxu0 0.0
    %48 = vmatpush1.msra.mxu0 0.0
    %49 = vmatprep.subr.mxu0 0.0
    %50 = vmatpush1.msra.mxu0 0.0
    %51 = vmatprep.subr.mxu0 0.0
    %52 = vmatpush1.msra.mxu0 0.0
    %53 = vmatprep.subr.mxu0 0.0
    %54 = vmatpush1.msra.mxu0 0.0
    %55 = vmatprep.subr.mxu0 0.0
    %56 = vmatpush1.msra.mxu0 0.0
    %57 = vmatprep.subr.mxu0 0.0
    %58 = vmatpush1.msra.mxu0 0.0
    %59 = vmatprep.subr.mxu0 0.0
    %60 = vmatpush1.msra.mxu0 0.0
    %61 = vmatprep.subr.mxu0 0.0
    %62 = vmatpush1.msra.mxu0 0.0
    %63 = vmatprep.subr.mxu0 0.0
    %64 = vmatpush1.msra.mxu0 0.0
    %65 = vmatprep.subr.mxu0 0.0
    %66 = vmatpush1.msra.mxu0 0.0
    %67 = vmatprep.subr.mxu0 0.0
    %68 = vmatpush1.msra.mxu0 0.0
    %69 = vmatprep.subr.mxu0 0.0
    %70 = vmatpush1.msra.mxu0 0.0
    %71 = vmatprep.subr.mxu0 0.0
    %72 = vmatpush1.msra.mxu0 0.0
    %73 = vmatprep.subr.mxu0 0.0
    %74 = vmatpush1.msra.mxu0 0.0
    %75 = vmatprep.subr.mxu0 0.0
    %76 = vmatpush1.msra.mxu0 0.0
    %77 = vmatprep.subr.mxu0 0.0
    %78 = vmatpush1.msra.mxu0 0.0
    %79 = vmatprep.subr.mxu0 0.0
    %80 = vmatpush1.msra.mxu0 0.0
    %81 = vmatprep.subr.mxu0 0.0
    %82 = vmatpush1.msra.mxu0 0.0
    %83 = vmatprep.subr.mxu0 0.0
    %84 = vmatpush1.msra.mxu0 0.0
    %85 = vmatprep.subr.mxu0 0.0
    %86 = vmatpush1.msra.mxu0 0.0
    %87 = vmatprep.subr.mxu0 0.0
    %88 = vmatpush1.msra.mxu0 0.0
    %89 = vmatprep.subr.mxu0 0.0
    %90 = vmatpush1.msra.mxu0 0.0
    %91 = vmatprep.subr.mxu0 0.0
    %92 = vmatpush1.msra.mxu0 0.0
    %93 = vmatprep.subr.mxu0 0.0
    %94 = vmatpush1.msra.mxu0 0.0
    %95 = vmatprep.subr.mxu0 0.0
    %96 = vmatpush1.msra.mxu0 0.0
    %97 = vmatprep.subr.mxu0 0.0
    %98 = vmatpush1.msra.mxu0 0.0
    %99 = vmatprep.mubr.f32.mxu0 0.0
    %100 = vmatmul.mubr.f32.gmra.mrb[0].mxu0 %v33
    %v101 = vpop.f32.mrb[0].mxu0
    %v102 = vadd.f32 %v29, %v101
    %v103 = vpop.f32.mrb[0].mxu0
    %104 = vdwg.mxu0
    %v105 = vmax.f32 %v102, 0.0
    %v106 = vld [vmem:[%s3] sm:$0xff]
    %v107 = vld [vmem:[%s3 + $0x8] sm:$0xff]
    %v108 = vld [vmem:[%s3 + $0x10] sm:$0xff]
    %v109 = vld [vmem:[%s3 + $0x18] sm:$0xff]
    %v110 = vld [vmem:[%s3 + $0x20] sm:$0xff]
    %v111 = vld [vmem:[%s3 + $0x28] sm:$0xff]
    %v112 = vld [vmem:[%s3 + $0x30] sm:$0xff]
    %v113 = vld [vmem:[%s3 + $0x38] sm:$0xff]
    %v114 = vld [vmem:[%s3 + $0x40] sm:$0xff]
    %v115 = vld [vmem:[%s3 + $0x48] sm:$0xff]
    %v116 = vld [vmem:[%s3 + $0x50] sm:$0xff]
    %v117 = vld [vmem:[%s3 + $0x58] sm:$0xff]
    %v118 = vld [vmem:[%s3 + $0x60] sm:$0xff]
    %v119 = vld [vmem:[%s3 + $0x68] sm:$0xff]
    %v120 = vld [vmem:[%s3 + $0x70] sm:$0xff]
    %v121 = vld [vmem:[%s3 + $0x78] sm:$0xff]
    %v122 = vld [vmem:[%s4] sm:$0x1]
    %v124 = vlaneseq
    %v125 = vshrl.u32 %v124, 7
    %v126 = vsub.s32 0, %v125
    %v127 = vrot.slane %v122, %v126
    %129 = vmatprep.subr.mxu0 0.0
    %130 = vmatpush1.msra.mxu0 %v106
    %131 = vmatprep.subr.mxu0 0.0
    %132 = vmatpush1.msra.mxu0 %v107
    %133 = vmatprep.subr.mxu0 0.0
    %134 = vmatpush1.msra.mxu0 %v108
    %135 = vmatprep.subr.mxu0 0.0
    %136 = vmatpush1.msra.mxu0 %v109
    %137 = vmatprep.subr.mxu0 0.0
    %138 = vmatpush1.msra.mxu0 %v110
    %139 = vmatprep.subr.mxu0 0.0
    %140 = vmatpush1.msra.mxu0 %v111
    %141 = vmatprep.subr.mxu0 0.0
    %142 = vmatpush1.msra.mxu0 %v112
    %143 = vmatprep.subr.mxu0 0.0
    %144 = vmatpush1.msra.mxu0 %v113
    %145 = vmatprep.subr.mxu0 0.0
    %146 = vmatpush1.msra.mxu0 %v114
    %147 = vmatprep.subr.mxu0 0.0
    %148 = vmatpush1.msra.mxu0 %v115
    %149 = vmatprep.subr.mxu0 0.0
    %150 = vmatpush1.msra.mxu0 %v116
    %151 = vmatprep.subr.mxu0 0.0
    %152 = vmatpush1.msra.mxu0 %v117
    %153 = vmatprep.subr.mxu0 0.0
    %154 = vmatpush1.msra.mxu0 %v118
    %155 = vmatprep.subr.mxu0 0.0
    %156 = vmatpush1.msra.mxu0 %v119
    %157 = vmatprep.subr.mxu0 0.0
    %158 = vmatpush1.msra.mxu0 %v120
    %159 = vmatprep.subr.mxu0 0.0
    %160 = vmatpush1.msra.mxu0 %v121
    %161 = vmatprep.subr.mxu0 0.0
    %162 = vmatpush1.msra.mxu0 0.0
    %163 = vmatprep.subr.mxu0 0.0
    %164 = vmatpush1.msra.mxu0 0.0
    %165 = vmatprep.subr.mxu0 0.0
    %166 = vmatpush1.msra.mxu0 0.0
    %167 = vmatprep.subr.mxu0 0.0
    %168 = vmatpush1.msra.mxu0 0.0
    %169 = vmatprep.subr.mxu0 0.0
    %170 = vmatpush1.msra.mxu0 0.0
    %171 = vmatprep.subr.mxu0 0.0
    %172 = vmatpush1.msra.mxu0 0.0
    %173 = vmatprep.subr.mxu0 0.0
    %174 = vmatpush1.msra.mxu0 0.0
    %175 = vmatprep.subr.mxu0 0.0
    %176 = vmatpush1.msra.mxu0 0.0
    %177 = vmatprep.subr.mxu0 0.0
    %178 = vmatpush1.msra.mxu0 0.0
    %179 = vmatprep.subr.mxu0 0.0
    %180 = vmatpush1.msra.mxu0 0.0
    %181 = vmatprep.subr.mxu0 0.0
    %182 = vmatpush1.msra.mxu0 0.0
    %183 = vmatprep.subr.mxu0 0.0
    %184 = vmatpush1.msra.mxu0 0.0
    %185 = vmatprep.subr.mxu0 0.0
    %186 = vmatpush1.msra.mxu0 0.0
    %187 = vmatprep.subr.mxu0 0.0
    %188 = vmatpush1.msra.mxu0 0.0
    %189 = vmatprep.subr.mxu0 0.0
    %190 = vmatpush1.msra.mxu0 0.0
    %191 = vmatprep.subr.mxu0 0.0
    %192 = vmatpush1.msra.mxu0 0.0
    %193 = vmatprep.mubr.f32.mxu0 0.0
    %194 = vmatmul.mubr.f32.gmra.mrb[0].mxu0 %v105
    %v195 = vpop.f32.mrb[0].mxu0
    %v196 = vadd.f32 %v127, %v195
    %v197 = vpop.f32.mrb[0].mxu0
    %198 = vdwg.mxu0
    %199 = vst.msk [vmem:[#allocation2] sm:$0xff] %vm31, %v196
    // Predicated region
    $region22: #{tpu_custom_call.1} parent=1 // pred_check
      _
    $region23: #{tpu_custom_call.1} parent=1 // pred_check_branch
      %201 = sbr.rel (0) target = $region25
    $region24: #{tpu_custom_call.1} parent=1 // pred_region
      %s203 = ssub.s32 128, 128
      %204 = vsyncadd [#allocation3], %s203
      %s206 = sshll.u32 [#allocation2], 4
      %s207 = int_to_ptr.vmem [resolvable:$true] %s206
      %209 = dma.vmem_to_hbm [thread:$0]  %s207, 128, %s5, [#allocation3]
    $region25: #{tpu_custom_call.1} parent=1 // pred_fallthru
      _
    // Predicated region
    $region26: #{tpu_custom_call.1} parent=1 // pred_check
      _
    $region27: #{tpu_custom_call.1} parent=1 // pred_check_branch
      %211 = sbr.rel (0) target = $region29
    $region28: #{tpu_custom_call.1} parent=1 // pred_region
      %212 = dma.done [#allocation3], 128
    $region29: #{tpu_custom_call.1} parent=1 // pred_fallthru
      _
    %213 = vsyncpa [#allocation3], 1

</llo_original>
